<compile_context>
chip_gen: v7x
topology: tpu7x:2x2x1
jax: 0.10.0
libtpu: 0.0.40
codegen_flags: <defaults>
</compile_context>

<pallas_src>
import functools

import jax
import jax.numpy as jnp
from jax.experimental import pallas as pl
from jax.experimental.pallas import tpu as pltpu

LN_EPS = 1e-5
NEG_INF = -1e30


# ------------------------------- utilities ---------------------------------

def _cparams(*sems):
    return pltpu.CompilerParams(
        dimension_semantics=sems,
        vmem_limit_bytes=32 * 1024 * 1024,
    )


def _pick_tile(n, pref, mult):
    """Largest divisor of n that is a multiple of `mult` and <= pref, else n."""
    if n <= pref:
        return n
    t = pref - (pref % mult)
    while t >= mult:
        if n % t == 0 and t % mult == 0:
            return t
        t -= mult
    return n


def _layer_norm(x, g, b, eps):
    mu = jnp.mean(x, axis=-1, keepdims=True)
    var = jnp.mean((x - mu) ** 2, axis=-1, keepdims=True)
    return (x - mu) * jax.lax.rsqrt(var + eps) * g + b


# ----------------------- fused LN + FFN + residual --------------------------

def _ln_ffn_kernel(x_ref, g_ref, b_ref, w1_ref, b1_ref, w2_ref, b2_ref, o_ref,
                   *, eps, scale):
    x = x_ref[0]                                            # (tt, D) f32
    xn = _layer_norm(x, g_ref[...], b_ref[...], eps)
    h = jnp.dot(xn.astype(w1_ref.dtype), w1_ref[...],
                preferred_element_type=jnp.float32) + b1_ref[...]
    h = jnp.maximum(h, 0.0)                                 # activation_fn='relu'
    y = jnp.dot(h.astype(w2_ref.dtype), w2_ref[...],
                preferred_element_type=jnp.float32) + b2_ref[...]
    o_ref[0] = x + scale * y                                # dropout = identity


def ln_ffn_residual(x, g, b, w1, b1, w2, b2, scale, eps=LN_EPS):
    B, T, D = x.shape
    F = w1.shape[1]
    tt = _pick_tile(T, 256, 8)
    # TODO(synk): for very large F (e.g. 4096 on v7x) also tile the hidden
    # dimension with accumulation instead of keeping both weights resident.
    return pl.pallas_call(
        functools.partial(_ln_ffn_kernel, eps=eps, scale=scale),
        out_shape=jax.ShapeDtypeStruct((B, T, D), jnp.float32),
        grid=(B, T // tt),
        in_specs=[pl.BlockSpec((1, tt, D), lambda i, j: (i, j, 0)),
                  pl.BlockSpec((1, D), lambda i, j: (0, 0)),
                  pl.BlockSpec((1, D), lambda i, j: (0, 0)),
                  pl.BlockSpec((D, F), lambda i, j: (0, 0)),
                  pl.BlockSpec((1, F), lambda i, j: (0, 0)),
                  pl.BlockSpec((F, D), lambda i, j: (0, 0)),
                  pl.BlockSpec((1, D), lambda i, j: (0, 0))],
        out_specs=pl.BlockSpec((1, tt, D), lambda i, j: (i, j, 0)),
        compiler_params=_cparams("parallel", "parallel"),
    )(x, g, b, w1, b1, w2, b2)


# ------------------------ fused LN + QKV projection --------------------------

def _ln_qkv_kernel(x_ref, g_ref, b_ref, wq_ref, wk_ref, wv_ref,
                   bq_ref, bk_ref, bv_ref, q_ref, k_ref, v_ref, *, eps):
    xn = _layer_norm(x_ref[0], g_ref[...], b_ref[...], eps)
    xb = xn.astype(wq_ref.dtype)
    q_ref[0] = (jnp.dot(xb, wq_ref[...], preferred_element_type=jnp.float32)
                + bq_ref[...]).astype(q_ref.dtype)
    k_ref[0] = (jnp.dot(xb, wk_ref[...], preferred_element_type=jnp.float32)
                + bk_ref[...]).astype(k_ref.dtype)
    v_ref[0] = (jnp.dot(xb, wv_ref[...], preferred_element_type=jnp.float32)
                + bv_ref[...]).astype(v_ref.dtype)


def ln_qkv(x, g, b, wq, wk, wv, bq, bk, bv, eps=LN_EPS):
    B, T, D = x.shape
    tt = _pick_tile(T, 256, 8)
    seq_spec = pl.BlockSpec((1, tt, D), lambda i, j: (i, j, 0))
    w_spec = pl.BlockSpec((D, D), lambda i, j: (0, 0))
    vec_spec = pl.BlockSpec((1, D), lambda i, j: (0, 0))
    qkv_shape = jax.ShapeDtypeStruct((B, T, D), jnp.bfloat16)
    return pl.pallas_call(
        functools.partial(_ln_qkv_kernel, eps=eps),
        out_shape=(qkv_shape, qkv_shape, qkv_shape),
        grid=(B, T // tt),
        in_specs=[seq_spec, vec_spec, vec_spec, w_spec, w_spec, w_spec,
                  vec_spec, vec_spec, vec_spec],
        out_specs=(seq_spec, seq_spec, seq_spec),
        compiler_params=_cparams("parallel", "parallel"),
    )(x, g, b, wq, wk, wv, bq, bk, bv)


# ------- flash attention + rel-pos bias + padding mask + out-proj + res -----

def _flash_attn_kernel(q_ref, k_ref, v_ref, bias_ref, pad_ref, xres_ref,
                       wo_ref, bo_ref, o_ref, m_sc, l_sc, acc_sc,
                       *, heads, scale):
    ki = pl.program_id(2)
    nk = pl.num_programs(2)

    @pl.when(ki == 0)
    def _():
        m_sc[...] = jnp.full(m_sc.shape, NEG_INF, m_sc.dtype)
        l_sc[...] = jnp.zeros(l_sc.shape, l_sc.dtype)
        acc_sc[...] = jnp.zeros(acc_sc.shape, acc_sc.dtype)

    q = q_ref[0]                      # (tq, D) bf16
    k = k_ref[0]                      # (tk, D) bf16
    v = v_ref[0]                      # (tk, D) bf16
    padb = pad_ref[0]                 # (1, tk) f32 additive key mask

    tq, D = q.shape
    hd = D // heads
    dn = (((1,), (1,)), ((), ()))     # q @ k^T: contract last dims, no batch

    for h in range(heads):            # static unroll over heads (2-D ops only)
        sl = slice(h * hd, (h + 1) * hd)
        qh, kh, vh = q[:, sl], k[:, sl], v[:, sl]
        s = jax.lax.dot_general(qh, kh, dn,
                                preferred_element_type=jnp.float32)
        s = s * scale + bias_ref[h] + padb            # (tq, tk) f32
        m_prev = m_sc[h]                              # (tq, 1)
        m_new = jnp.maximum(m_prev, jnp.max(s, axis=-1, keepdims=True))
        alpha = jnp.exp(m_prev - m_new)
        p = jnp.exp(s - m_new)
        l_sc[h] = alpha * l_sc[h] + jnp.sum(p, axis=-1, keepdims=True)
        pv = jnp.dot(p.astype(jnp.bfloat16), vh,
                     preferred_element_type=jnp.float32)
        acc_sc[h] = alpha * acc_sc[h] + pv
        m_sc[h] = m_new

    @pl.when(ki == nk - 1)
    def _():
        wo = wo_ref[...]                              # (D, D) bf16
        y = jnp.zeros((tq, D), jnp.float32)
        for h in range(heads):
            col = acc_sc[h] * pl.reciprocal(l_sc[h], approx=True)   # (tq, hd)
            # per-head slice of the output projection == concat(heads) @ wo
            y = y + jnp.dot(col.astype(wo.dtype), wo[h * hd:(h + 1) * hd, :],
                            preferred_element_type=jnp.float32)
        o_ref[0] = xres_ref[0] + y + bo_ref[...]      # lane-dense (tq, D)


def flash_attention_out(q, k, v, bias, pad_bias, x_res, wo, bo, heads):
    B, T, D = x_res.shape
    hd = D // heads
    tq = _pick_tile(T, 256, 8)
    tk = _pick_tile(T, 512, 128)
    return pl.pallas_call(
        functools.partial(_flash_attn_kernel, heads=heads, scale=hd ** -0.5),
        out_shape=jax.ShapeDtypeStruct((B, T, D), jnp.float32),
        grid=(B, T // tq, T // tk),
        in_specs=[
            pl.BlockSpec((1, tq, D), lambda b, qi, ki: (b, qi, 0)),       # q
            pl.BlockSpec((1, tk, D), lambda b, qi, ki: (b, ki, 0)),       # k
            pl.BlockSpec((1, tk, D), lambda b, qi, ki: (b, ki, 0)),       # v
            pl.BlockSpec((heads, tq, tk), lambda b, qi, ki: (0, qi, ki)),  # bias
            pl.BlockSpec((1, 1, tk), lambda b, qi, ki: (b, 0, ki)),       # pad
            pl.BlockSpec((1, tq, D), lambda b, qi, ki: (b, qi, 0)),       # resid
            pl.BlockSpec((D, D), lambda b, qi, ki: (0, 0)),               # w_out
            pl.BlockSpec((1, D), lambda b, qi, ki: (0, 0)),               # b_out
        ],
        out_specs=pl.BlockSpec((1, tq, D), lambda b, qi, ki: (b, qi, 0)),
        scratch_shapes=[pltpu.VMEM((heads, tq, 1), jnp.float32),   # running max
                        pltpu.VMEM((heads, tq, 1), jnp.float32),   # running sum
                        pltpu.VMEM((heads, tq, hd), jnp.float32)],  # acc
        compiler_params=_cparams("parallel", "parallel", "arbitrary"),
    )(q, k, v, bias, pad_bias, x_res, wo, bo)


# --------------- fused LN + MultiScaleCAR + residual -------------------------

def _ln_car_kernel(*refs, eps, kernel_sizes):
    n = len(kernel_sizes)
    x_ref, g_ref, b_ref, wc_ref, bc_ref = refs[:5]
    dw_refs = refs[5:5 + 2 * n]
    we_ref, be_ref, o_ref = refs[5 + 2 * n:5 + 2 * n + 3]

    x = x_ref[0]                                            # (T, D) f32
    xn = _layer_norm(x, g_ref[...], b_ref[...], eps)
    c = jnp.dot(xn.astype(wc_ref.dtype), wc_ref[...],
                preferred_element_type=jnp.float32) + bc_ref[...]   # (T, C)
    T = c.shape[0]
    t_idx = jax.lax.broadcasted_iota(jnp.int32, c.shape, 0)

    merged = jnp.zeros_like(c)
    for j, K in enumerate(kernel_sizes):
        wj = dw_refs[2 * j][...]                            # (K, C) f32
        bj = dw_refs[2 * j + 1][...]                        # (1, C) f32
        pad = K // 2
        acc = jnp.zeros_like(c)
        for tap in range(K):                                # static unroll
            off = tap - pad
            if off == 0:
                shifted = c
            else:
                # shifted[t] = c[t + off] (mod T), masked to zero out of range.
                shifted = pltpu.roll(c, (-off) % T, 0)
            valid = jnp.logical_and(t_idx + off >= 0, t_idx + off < T)
            acc = acc + jnp.where(valid, shifted, 0.0) * wj[tap:tap + 1, :]
        merged = merged + jnp.maximum(acc + bj, 0.0)        # ReLU per branch
    m = merged * (1.0 / n)                                  # mean over scales
    y = jnp.dot(m.astype(we_ref.dtype), we_ref[...],
                preferred_element_type=jnp.float32) + be_ref[...]
    o_ref[0] = x + y                                        # residual


def ln_car_residual(x, g, b, wc, bc, dw_weights, dw_biases, we, be, eps=LN_EPS):
    # TODO(synk): MultiScaleCAR source not provided; implemented as
    # compress(Linear) -> parallel depthwise convs (ReLU) -> mean -> expand.
    # TODO(synk): for very long T, tile the time axis with a conv halo.
    B, T, D = x.shape
    C = wc.shape[1]
    kernel_sizes = tuple(int(w.shape[0]) for w in dw_weights)
    dw_inputs, dw_specs = [], []
    for w, bb in zip(dw_weights, dw_biases):
        K = int(w.shape[0])
        dw_inputs += [w, bb]
        dw_specs += [pl.BlockSpec((K, C), lambda i: (0, 0)),
                     pl.BlockSpec((1, C), lambda i: (0, 0))]
    return pl.pallas_call(
        functools.partial(_ln_car_kernel, eps=eps, kernel_sizes=kernel_sizes),
        out_shape=jax.ShapeDtypeStruct((B, T, D), jnp.float32),
        grid=(B,),
        in_specs=[pl.BlockSpec((1, T, D), lambda i: (i, 0, 0)),
                  pl.BlockSpec((1, D), lambda i: (0, 0)),
                  pl.BlockSpec((1, D), lambda i: (0, 0)),
                  pl.BlockSpec((D, C), lambda i: (0, 0)),
                  pl.BlockSpec((1, C), lambda i: (0, 0))]
                 + dw_specs
                 + [pl.BlockSpec((C, D), lambda i: (0, 0)),
                    pl.BlockSpec((1, D), lambda i: (0, 0))],
        out_specs=pl.BlockSpec((1, T, D), lambda i: (i, 0, 0)),
        compiler_params=_cparams("parallel"),
    )(x, g, b, wc, bc, *dw_inputs, we, be)


# ------------------------------ model glue ---------------------------------

def rel_pos_bias(table, T, max_rel):
    # TODO(synk): RelativePositionalBias source not provided; implemented as a
    # clipped relative-distance embedding lookup -> (H, T, T) additive bias.
    # TODO(synk): for very long T generate the bias per (tq, tk) tile inside
    # the attention kernel instead of materializing (H, T, T) in HBM.
    pos = jnp.arange(T)
    rel = jnp.clip(pos[None, :] - pos[:, None], -max_rel, max_rel) + max_rel
    return jnp.transpose(table[rel], (2, 0, 1)).astype(jnp.float32)


def conformer_layer(x, pad_bias, p):
    B, T, D = x.shape
    H = p['heads']

    # --- FFN1 (half-step), fused LN + fc1 + relu + fc2 + residual ---
    x = ln_ffn_residual(x, p['ln_ffn1_g'], p['ln_ffn1_b'],
                        p['ffn1_w1'], p['ffn1_b1'],
                        p['ffn1_w2'], p['ffn1_b2'], scale=0.5)

    # --- Self-attention with relative positional bias + key padding mask ---
    q, k, v = ln_qkv(x, p['ln_attn_g'], p['ln_attn_b'],
                     p['w_q'], p['w_k'], p['w_v'],
                     p['b_q'], p['b_k'], p['b_v'])
    bias = rel_pos_bias(p['rel_table'], T, p['max_rel'])          # (H, T, T)
    x = flash_attention_out(q, k, v, bias, pad_bias, x,
                            p['w_out'], p['b_out'], heads=H)

    # --- Multi-scale CAR block, fused LN + CAR + residual ---
    x = ln_car_residual(x, p['ln_car_g'], p['ln_car_b'],
                        p['car_wc'], p['car_bc'],
                        p['car_dw_w'], p['car_dw_b'],
                        p['car_we'], p['car_be'])

    # --- FFN2 (half-step) ---
    x = ln_ffn_residual(x, p['ln_ffn2_g'], p['ln_ffn2_b'],
                        p['ffn2_w1'], p['ffn2_b1'],
                        p['ffn2_w2'], p['ffn2_b2'], scale=0.5)
    return x


def conformer_encoder(x, params, padding_mask=None, layer=None):
    # Top-level dropout / layerdrop are identity in eval mode.
    B, T, _ = x.shape
    if padding_mask is None:
        pad_bias = jnp.zeros((B, 1, T), jnp.float32)
    else:
        pad_bias = jnp.where(padding_mask[:, None, :], NEG_INF, 0.0
                             ).astype(jnp.float32)

    layer_outputs = []
    for i, lp in enumerate(params['layers']):
        x = conformer_layer(x, pad_bias, lp)
        if layer is not None and i + 1 == layer:
            # Faithful to the reference module: it appends twice in this case.
            layer_outputs.append(x)
        layer_outputs.append(x)
    # layer_norm_first=False (default) -> final_layer_norm is None.
    if layer is not None and 0 < layer <= len(layer_outputs):
        x = layer_outputs[layer - 1]
    return x, layer_outputs


# ---------------------------- parameter init --------------------------------

def init_params(key, *, layers, D, F, H, C, kernel_sizes, max_rel):
    def w(k, shape, s=0.02, dtype=jnp.bfloat16):
        return (jax.random.normal(k, shape, dtype=jnp.float32) * s).astype(dtype)

    layer_params = []
    for li in range(layers):
        lk = jax.random.fold_in(key, li)
        ks = jax.random.split(lk, 16)
        lp = dict(
            ln_ffn1_g=jnp.ones((1, D), jnp.float32),
            ln_ffn1_b=jnp.zeros((1, D), jnp.float32),
            ffn1_w1=w(ks[0], (D, F)), ffn1_b1=jnp.zeros((1, F), jnp.float32),
            ffn1_w2=w(ks[1], (F, D)), ffn1_b2=jnp.zeros((1, D), jnp.float32),
            ln_attn_g=jnp.ones((1, D), jnp.float32),
            ln_attn_b=jnp.zeros((1, D), jnp.float32),
            w_q=w(ks[2], (D, D)), b_q=jnp.zeros((1, D), jnp.float32),
            w_k=w(ks[3], (D, D)), b_k=jnp.zeros((1, D), jnp.float32),
            w_v=w(ks[4], (D, D)), b_v=jnp.zeros((1, D), jnp.float32),
            w_out=w(ks[5], (D, D)), b_out=jnp.zeros((1, D), jnp.float32),
            rel_table=w(ks[6], (2 * max_rel + 1, H), dtype=jnp.float32),
            ln_car_g=jnp.ones((1, D), jnp.float32),
            ln_car_b=jnp.zeros((1, D), jnp.float32),
            car_wc=w(ks[7], (D, C)), car_bc=jnp.zeros((1, C), jnp.float32),
            car_dw_w=[w(ks[8 + j], (kk, C), 0.1, dtype=jnp.float32)
                      for j, kk in enumerate(kernel_sizes)],
            car_dw_b=[jnp.zeros((1, C), jnp.float32) for _ in kernel_sizes],
            car_we=w(ks[12], (C, D)), car_be=jnp.zeros((1, D), jnp.float32),
            ln_ffn2_g=jnp.ones((1, D), jnp.float32),
            ln_ffn2_b=jnp.zeros((1, D), jnp.float32),
            ffn2_w1=w(ks[13], (D, F)), ffn2_b1=jnp.zeros((1, F), jnp.float32),
            ffn2_w2=w(ks[14], (F, D)), ffn2_b2=jnp.zeros((1, D), jnp.float32),
            heads=H, max_rel=max_rel,
        )
        layer_params.append(lp)
    return dict(layers=layer_params)


if __name__ == "__main__":
    B, T, D, F, H, C = 2, 16, 32, 64, 4, 16
    kernel_sizes = (3, 5, 7)
    max_rel = 8
    n_layers = 2

    key = jax.random.PRNGKey(0)
    xkey, pkey = jax.random.split(key)
    x = jax.random.normal(xkey, (B, T, D), dtype=jnp.float32)
    params = init_params(pkey, layers=n_layers, D=D, F=F, H=H, C=C,
                         kernel_sizes=kernel_sizes, max_rel=max_rel)

    # No padding mask.
    y, layer_outputs = conformer_encoder(x, params, padding_mask=None,
                                         layer=None)
    jax.block_until_ready(y)
    jax.block_until_ready(layer_outputs)
    assert y.shape == (B, T, D)
    assert len(layer_outputs) == n_layers
    assert all(o.shape == (B, T, D) for o in layer_outputs)
    assert bool(jnp.all(jnp.isfinite(y)))

    # Exercise the key-padding-mask path (last 4 frames of batch 1 padded).
    pmask = jnp.zeros((B, T), jnp.bool_).at[1, T - 4:].set(True)
    y2, _ = conformer_encoder(x, params, padding_mask=pmask, layer=None)
    jax.block_until_ready(y2)
    assert bool(jnp.all(jnp.isfinite(y2)))

    print("KERNEL_OK")
</pallas_src>

<mosaic_0001>
module attributes {stable_mosaic.version = 11 : i64} {
  func.func @_ln_ffn_kernel(%arg0: i32, %arg1: i32, %arg2: memref<1x16x32xf32, #tpu.memory_space<vmem>>, %arg3: memref<1x32xf32, #tpu.memory_space<vmem>>, %arg4: memref<1x32xf32, #tpu.memory_space<vmem>>, %arg5: memref<32x64xbf16, #tpu.memory_space<vmem>>, %arg6: memref<1x64xf32, #tpu.memory_space<vmem>>, %arg7: memref<64x32xbf16, #tpu.memory_space<vmem>>, %arg8: memref<1x32xf32, #tpu.memory_space<vmem>>, %arg9: memref<1x16x32xf32, #tpu.memory_space<vmem>>) attributes {dimension_semantics = [#tpu.dimension_semantics<parallel>, #tpu.dimension_semantics<parallel>], iteration_bounds = array<i64: 2, 1>, scalar_prefetch = 0 : i64, scratch_operands = 0 : i64, tpu.core_type = #tpu.core_type<tc>, window_params = [{transform_indices = @transform_0, window_bounds = array<i64: 1, 16, 32>}, {pipeline_mode = #tpu.pipeline_mode<synchronous>, transform_indices = @transform_1, window_bounds = array<i64: 1, 32>}, {pipeline_mode = #tpu.pipeline_mode<synchronous>, transform_indices = @transform_2, window_bounds = array<i64: 1, 32>}, {pipeline_mode = #tpu.pipeline_mode<synchronous>, transform_indices = @transform_3, window_bounds = array<i64: 32, 64>}, {pipeline_mode = #tpu.pipeline_mode<synchronous>, transform_indices = @transform_4, window_bounds = array<i64: 1, 64>}, {pipeline_mode = #tpu.pipeline_mode<synchronous>, transform_indices = @transform_5, window_bounds = array<i64: 64, 32>}, {pipeline_mode = #tpu.pipeline_mode<synchronous>, transform_indices = @transform_6, window_bounds = array<i64: 1, 32>}, {transform_indices = @transform_7, window_bounds = array<i64: 1, 16, 32>}]} {
    %c0 = arith.constant 0 : index
    %c0_0 = arith.constant 0 : index
    %c0_1 = arith.constant 0 : index
    %0 = vector.load %arg2[%c0, %c0_0, %c0_1] : memref<1x16x32xf32, #tpu.memory_space<vmem>>, vector<1x16x32xf32>
    %1 = vector.shape_cast %0 : vector<1x16x32xf32> to vector<16x32xf32>
    %c0_2 = arith.constant 0 : index
    %c0_3 = arith.constant 0 : index
    %2 = vector.load %arg3[%c0_2, %c0_3] : memref<1x32xf32, #tpu.memory_space<vmem>>, vector<1x32xf32>
    %c0_4 = arith.constant 0 : index
    %c0_5 = arith.constant 0 : index
    %3 = vector.load %arg4[%c0_4, %c0_5] : memref<1x32xf32, #tpu.memory_space<vmem>>, vector<1x32xf32>
    %cst = arith.constant dense<0.000000e+00> : vector<16xf32>
    %4 = vector.multi_reduction <add>, %1, %cst [1] : vector<16x32xf32> to vector<16xf32>
    %5 = vector.shape_cast %4 : vector<16xf32> to vector<16x1xf32>
    %cst_6 = arith.constant 3.200000e+01 : f32
    %6 = vector.broadcast %cst_6 : f32 to vector<16x1xf32>
    %7 = arith.divf %5, %6 : vector<16x1xf32>
    %8 = vector.broadcast %7 : vector<16x1xf32> to vector<16x32xf32>
    %9 = arith.subf %1, %8 : vector<16x32xf32>
    %10 = arith.mulf %9, %9 : vector<16x32xf32>
    %cst_7 = arith.constant dense<0.000000e+00> : vector<16xf32>
    %11 = vector.multi_reduction <add>, %10, %cst_7 [1] : vector<16x32xf32> to vector<16xf32>
    %12 = vector.shape_cast %11 : vector<16xf32> to vector<16x1xf32>
    %cst_8 = arith.constant 3.200000e+01 : f32
    %13 = vector.broadcast %cst_8 : f32 to vector<16x1xf32>
    %14 = arith.divf %12, %13 : vector<16x1xf32>
    %15 = vector.broadcast %7 : vector<16x1xf32> to vector<16x32xf32>
    %16 = arith.subf %1, %15 : vector<16x32xf32>
    %cst_9 = arith.constant 9.99999974E-6 : f32
    %17 = vector.broadcast %cst_9 : f32 to vector<16x1xf32>
    %18 = arith.addf %14, %17 : vector<16x1xf32>
    %19 = math.rsqrt %18 : vector<16x1xf32>
    %20 = vector.broadcast %19 : vector<16x1xf32> to vector<16x32xf32>
    %21 = arith.mulf %16, %20 : vector<16x32xf32>
    %22 = vector.broadcast %2 : vector<1x32xf32> to vector<16x32xf32>
    %23 = arith.mulf %21, %22 : vector<16x32xf32>
    %24 = vector.broadcast %3 : vector<1x32xf32> to vector<16x32xf32>
    %25 = arith.addf %23, %24 : vector<16x32xf32>
    %26 = arith.truncf %25 : vector<16x32xf32> to vector<16x32xbf16>
    %c0_10 = arith.constant 0 : index
    %c0_11 = arith.constant 0 : index
    %27 = vector.load %arg5[%c0_10, %c0_11] : memref<32x64xbf16, #tpu.memory_space<vmem>>, vector<32x64xbf16>
    %cst_12 = arith.constant dense<0.000000e+00> : vector<16x64xf32>
    %28 = tpu.matmul %26, %27, %cst_12 {dimension_numbers = #tpu.dot_dimension_numbers<[1], [0], [0], [1], [0, 0, 1, 1], [], []>} : vector<16x32xbf16>, vector<32x64xbf16>, vector<16x64xf32> -> vector<16x64xf32>
    %c0_13 = arith.constant 0 : index
    %c0_14 = arith.constant 0 : index
    %29 = vector.load %arg6[%c0_13, %c0_14] : memref<1x64xf32, #tpu.memory_space<vmem>>, vector<1x64xf32>
    %30 = vector.broadcast %29 : vector<1x64xf32> to vector<16x64xf32>
    %31 = arith.addf %28, %30 : vector<16x64xf32>
    %cst_15 = arith.constant 0.000000e+00 : f32
    %32 = vector.broadcast %cst_15 : f32 to vector<16x64xf32>
    %33 = arith.maximumf %31, %32 : vector<16x64xf32>
    %34 = arith.truncf %33 : vector<16x64xf32> to vector<16x64xbf16>
    %c0_16 = arith.constant 0 : index
    %c0_17 = arith.constant 0 : index
    %35 = vector.load %arg7[%c0_16, %c0_17] : memref<64x32xbf16, #tpu.memory_space<vmem>>, vector<64x32xbf16>
    %cst_18 = arith.constant dense<0.000000e+00> : vector<16x32xf32>
    %36 = tpu.matmul %34, %35, %cst_18 {dimension_numbers = #tpu.dot_dimension_numbers<[1], [0], [0], [1], [0, 0, 1, 1], [], []>} : vector<16x64xbf16>, vector<64x32xbf16>, vector<16x32xf32> -> vector<16x32xf32>
    %c0_19 = arith.constant 0 : index
    %c0_20 = arith.constant 0 : index
    %37 = vector.load %arg8[%c0_19, %c0_20] : memref<1x32xf32, #tpu.memory_space<vmem>>, vector<1x32xf32>
    %38 = vector.broadcast %37 : vector<1x32xf32> to vector<16x32xf32>
    %39 = arith.addf %36, %38 : vector<16x32xf32>
    %cst_21 = arith.constant 5.000000e-01 : f32
    %40 = vector.broadcast %cst_21 : f32 to vector<16x32xf32>
    %41 = arith.mulf %40, %39 : vector<16x32xf32>
    %42 = arith.addf %1, %41 : vector<16x32xf32>
    %c0_22 = arith.constant 0 : index
    %c0_23 = arith.constant 0 : index
    %c0_24 = arith.constant 0 : index
    %43 = vector.load %arg9[%c0_22, %c0_23, %c0_24] : memref<1x16x32xf32, #tpu.memory_space<vmem>>, vector<1x16x32xf32>
    %44 = vector.shape_cast %43 : vector<1x16x32xf32> to vector<16x32xf32>
    %45 = vector.shape_cast %42 : vector<16x32xf32> to vector<1x16x32xf32>
    tpu.vector_store %arg9[%c0_22, %c0_23, %c0_24], %45 {strides = array<i32>} : memref<1x16x32xf32, #tpu.memory_space<vmem>>, vector<1x16x32xf32>,
    return
  }
  func.func @transform_0(%arg0: i32, %arg1: i32) -> (i32, i32, i32) {
    %c0_i32 = arith.constant 0 : i32
    %c0_i32_0 = arith.constant 0 : i32
    return %arg0, %arg1, %c0_i32 : i32, i32, i32
  }
  func.func @transform_1(%arg0: i32, %arg1: i32) -> (i32, i32) {
    %c0_i32 = arith.constant 0 : i32
    %c0_i32_0 = arith.constant 0 : i32
    %c0_i32_1 = arith.constant 0 : i32
    return %c0_i32, %c0_i32_0 : i32, i32
  }
  func.func @transform_2(%arg0: i32, %arg1: i32) -> (i32, i32) {
    %c0_i32 = arith.constant 0 : i32
    %c0_i32_0 = arith.constant 0 : i32
    %c0_i32_1 = arith.constant 0 : i32
    return %c0_i32, %c0_i32_0 : i32, i32
  }
  func.func @transform_3(%arg0: i32, %arg1: i32) -> (i32, i32) {
    %c0_i32 = arith.constant 0 : i32
    %c0_i32_0 = arith.constant 0 : i32
    %c0_i32_1 = arith.constant 0 : i32
    return %c0_i32, %c0_i32_0 : i32, i32
  }
  func.func @transform_4(%arg0: i32, %arg1: i32) -> (i32, i32) {
    %c0_i32 = arith.constant 0 : i32
    %c0_i32_0 = arith.constant 0 : i32
    %c0_i32_1 = arith.constant 0 : i32
    return %c0_i32, %c0_i32_0 : i32, i32
  }
  func.func @transform_5(%arg0: i32, %arg1: i32) -> (i32, i32) {
    %c0_i32 = arith.constant 0 : i32
    %c0_i32_0 = arith.constant 0 : i32
    %c0_i32_1 = arith.constant 0 : i32
    return %c0_i32, %c0_i32_0 : i32, i32
  }
  func.func @transform_6(%arg0: i32, %arg1: i32) -> (i32, i32) {
    %c0_i32 = arith.constant 0 : i32
    %c0_i32_0 = arith.constant 0 : i32
    %c0_i32_1 = arith.constant 0 : i32
    return %c0_i32, %c0_i32_0 : i32, i32
  }
  func.func @transform_7(%arg0: i32, %arg1: i32) -> (i32, i32, i32) {
    %c0_i32 = arith.constant 0 : i32
    %c0_i32_0 = arith.constant 0 : i32
    return %arg0, %arg1, %c0_i32 : i32, i32, i32
  }
}

</mosaic_0001>

<llo_original>
// kernel: tpu_custom_call.1
$region0: #{tpu_custom_call.1}
  #allocation0 [shape = 'u32[]', space=smem, size = 0x4, offset = 0x4, fixed_abs, tag = 'smem constant byte address 0x4 - core index']
  #allocation1 [shape = 'u32[144,128]{1,0:T(1,128)}', space=vmem, size = 0x12000, scoped, tag = 'internal scratch']
  %s0 = inlined_call_operand.vmem [shape: f32[2,16,32], index: 0, kind: input, shape index: {}]
  %s1 = inlined_call_operand.vmem [shape: f32[1,32], index: 1, kind: input, shape index: {}]
  %s2 = inlined_call_operand.vmem [shape: f32[1,32], index: 2, kind: input, shape index: {}]
  %s3 = inlined_call_operand.vmem [shape: bf16[32,64], index: 3, kind: input, shape index: {}]
  %s4 = inlined_call_operand.hbm [shape: f32[1,64], index: 4, kind: input, shape index: {}]
  %s5 = inlined_call_operand.vmem [shape: bf16[64,32], index: 5, kind: input, shape index: {}]
  %s6 = inlined_call_operand.vmem [shape: f32[1,32], index: 6, kind: input, shape index: {}]
  %s7 = inlined_call_operand.hbm [shape: f32[2,16,32], index: 7, kind: output, shape index: {}]
  %s8 = sld [smem:[#allocation0]]
  $region65: #{tpu_custom_call.1} parent=0
    _
  %s10 = ssub.s32 1, %s8
  %s11 = scalar_select 0, %s10, %s8
  $region1: #{tpu_custom_call.1} parent=0
    #allocation2 [shape = 'u8[512]{0}', space=vmem, size = 0x400, scoped, tag = 'input window, operand 4, single buffered']
    #allocation3 [shape = 's32[2]{0}', space=sflag, size = 0x8, scoped, tag = 'scoped memory for tpu_custom_call.1']
    #allocation4 [shape = 's32[2]{0}', space=sflag, size = 0x8, scoped, tag = 'scoped memory for tpu_custom_call.1']
    #allocation5 [shape = 'u8[16384]{0}', space=vmem, size = 0x4000, scoped, tag = 'output window, operand 0']
    %12 = vsyncpa [#allocation3], 0
    %13 = vsyncpa [#allocation4], 0
    %s14 = scalar_lea.sflag [#allocation4], 1
    %15 = vsyncpa %s14, 0
    loop: start=0, step=1, limit=4
    $region2: #{tpu_custom_call.1} parent=1 // loop_pre_header
      _
    $region3: #{tpu_custom_call.1} parent=1 // loop_header
      %s17 = sphi 0, %s21
      %p18 = scmp.ge.s32.totalorder %s17, 4
      %s24 = sphi 0, %s36
      %s25 = sphi 0, %s32
      %s26 = sphi 0, %s24
      %s27 = sphi 0, %s25
      %s28 = sphi 0, %s26
      %s29 = sphi 0, %s27
      %s41 = sphi 0, %s43
      %s44 = sphi 0, %s41
      %s45 = sphi 0, %s44
      %s61 = sphi 0, %s45
      %s65 = sphi 0, %s65
      %s67 = sphi 0, %s65
      %s68 = sphi 0, %s67
      %s82 = sphi 0, %s68
      %s86 = sphi 0, %s86
      %s88 = sphi 0, %s86
      %s89 = sphi 0, %s88
      %s103 = sphi 0, %s89
      %s107 = sphi 0, %s107
      %s109 = sphi 0, %s107
      %s110 = sphi 0, %s109
      %s124 = sphi 0, %s110
      %s128 = sphi 0, %s128
      %s130 = sphi 0, %s128
      %s131 = sphi 0, %s130
      %s145 = sphi 0, %s131
      %s149 = sphi 0, %s149
      %s151 = sphi 0, %s149
      %s152 = sphi 0, %s151
      %s166 = sphi 0, %s152
      %s170 = sphi 0, %s170
      %s172 = sphi 0, %s170
      %s173 = sphi 0, %s172
      %s187 = sphi 0, %s173
      %s195 = sphi 0, %s197
      %s198 = sphi 0, %s195
      %s199 = sphi 0, %s198
      %s215 = sphi 0, %s199
    $region4: #{tpu_custom_call.1} parent=1 // loop_header_branch
      %20 = sbr.rel (%p18) target = $region8
    $region5: #{tpu_custom_call.1} parent=1 // loop_body
      %s22 = ssub.s32 %s17, 1
      %s23 = ssub.s32 %s17, 2
      %s30 = sadd.s32 1, %s25
      %p31 = scmp.ge.s32.totalorder %s30, 1
      %s32 = scalar_select %p31, 0, %s30
      %s33 = sadd.s32 1, %s24
      %s34 = scalar_select %p31, %s33, %s24
      %p35 = scmp.ge.s32.totalorder %s34, 2
      %s36 = scalar_select %p35, 0, %s34
      %s37 = ssub.s32 %s24, %s36
      %s38 = ssub.s32 %s25, %s32
      %s39 = sor.u32 %s37, %s38
      %p40 = scmp.eq.s32.totalorder %s39, 0
      %s42 = sadd.s32 %s41, 1
      %s43 = scalar_select %p40, %s41, %s42
      %p46 = pneg %p40
      %p47 = scmp.eq.s32.totalorder %s17, 1
      %p48 = por %p46, %p47
      %p49 = scmp.ne.s32.totalorder %s41, %s44
      %p50 = scmp.eq.s32.totalorder %s17, 0
      %p51 = por %p49, %p50
      %p52 = scmp.ne.s32.totalorder %s41, %s44
      %p53 = scmp.eq.s32.totalorder %s22, 1
      %p54 = por %p52, %p53
      %p55 = scmp.ne.s32.totalorder %s44, %s45
      %p56 = scmp.eq.s32.totalorder %s22, 0
      %p57 = por %p55, %p56
      %p58 = scmp.ne.s32.totalorder %s44, %s45
      %p59 = scmp.eq.s32.totalorder %s23, 1
      %p60 = por %p58, %p59
      %p62 = scmp.ne.s32.totalorder %s45, %s61
      %p63 = scmp.eq.s32.totalorder %s23, 0
      %p64 = por %p62, %p63
      %s66 = sadd.s32 %s65, 1
      %p69 = scmp.eq.s32.totalorder %s17, 1
      %p70 = scmp.ne.s32.totalorder %s65, %s67
      %p71 = scmp.eq.s32.totalorder %s17, 0
      %p72 = por %p70, %p71
      %p73 = scmp.ne.s32.totalorder %s65, %s67
      %p74 = scmp.eq.s32.totalorder %s22, 1
      %p75 = por %p73, %p74
      %p76 = scmp.ne.s32.totalorder %s67, %s68
      %p77 = scmp.eq.s32.totalorder %s22, 0
      %p78 = por %p76, %p77
      %p79 = scmp.ne.s32.totalorder %s67, %s68
      %p80 = scmp.eq.s32.totalorder %s23, 1
      %p81 = por %p79, %p80
      %p83 = scmp.ne.s32.totalorder %s68, %s82
      %p84 = scmp.eq.s32.totalorder %s23, 0
      %p85 = por %p83, %p84
      %s87 = sadd.s32 %s86, 1
      %p90 = scmp.eq.s32.totalorder %s17, 1
      %p91 = scmp.ne.s32.totalorder %s86, %s88
      %p92 = scmp.eq.s32.totalorder %s17, 0
      %p93 = por %p91, %p92
      %p94 = scmp.ne.s32.totalorder %s86, %s88
      %p95 = scmp.eq.s32.totalorder %s22, 1
      %p96 = por %p94, %p95
      %p97 = scmp.ne.s32.totalorder %s88, %s89
      %p98 = scmp.eq.s32.totalorder %s22, 0
      %p99 = por %p97, %p98
      %p100 = scmp.ne.s32.totalorder %s88, %s89
      %p101 = scmp.eq.s32.totalorder %s23, 1
      %p102 = por %p100, %p101
      %p104 = scmp.ne.s32.totalorder %s89, %s103
      %p105 = scmp.eq.s32.totalorder %s23, 0
      %p106 = por %p104, %p105
      %s108 = sadd.s32 %s107, 1
      %p111 = scmp.eq.s32.totalorder %s17, 1
      %p112 = scmp.ne.s32.totalorder %s107, %s109
      %p113 = scmp.eq.s32.totalorder %s17, 0
      %p114 = por %p112, %p113
      %p115 = scmp.ne.s32.totalorder %s107, %s109
      %p116 = scmp.eq.s32.totalorder %s22, 1
      %p117 = por %p115, %p116
      %p118 = scmp.ne.s32.totalorder %s109, %s110
      %p119 = scmp.eq.s32.totalorder %s22, 0
      %p120 = por %p118, %p119
      %p121 = scmp.ne.s32.totalorder %s109, %s110
      %p122 = scmp.eq.s32.totalorder %s23, 1
      %p123 = por %p121, %p122
      %p125 = scmp.ne.s32.totalorder %s110, %s124
      %p126 = scmp.eq.s32.totalorder %s23, 0
      %p127 = por %p125, %p126
      %s129 = sadd.s32 %s128, 1
      %p132 = scmp.eq.s32.totalorder %s17, 1
      %p133 = scmp.ne.s32.totalorder %s128, %s130
      %p134 = scmp.eq.s32.totalorder %s17, 0
      %p135 = por %p133, %p134
      %p136 = scmp.ne.s32.totalorder %s128, %s130
      %p137 = scmp.eq.s32.totalorder %s22, 1
      %p138 = por %p136, %p137
      %p139 = scmp.ne.s32.totalorder %s130, %s131
      %p140 = scmp.eq.s32.totalorder %s22, 0
      %p141 = por %p139, %p140
      %p142 = scmp.ne.s32.totalorder %s130, %s131
      %p143 = scmp.eq.s32.totalorder %s23, 1
      %p144 = por %p142, %p143
      %p146 = scmp.ne.s32.totalorder %s131, %s145
      %p147 = scmp.eq.s32.totalorder %s23, 0
      %p148 = por %p146, %p147
      %s150 = sadd.s32 %s149, 1
      %p153 = scmp.eq.s32.totalorder %s17, 1
      %p154 = scmp.ne.s32.totalorder %s149, %s151
      %p155 = scmp.eq.s32.totalorder %s17, 0
      %p156 = por %p154, %p155
      %p157 = scmp.ne.s32.totalorder %s149, %s151
      %p158 = scmp.eq.s32.totalorder %s22, 1
      %p159 = por %p157, %p158
      %p160 = scmp.ne.s32.totalorder %s151, %s152
      %p161 = scmp.eq.s32.totalorder %s22, 0
      %p162 = por %p160, %p161
      %p163 = scmp.ne.s32.totalorder %s151, %s152
      %p164 = scmp.eq.s32.totalorder %s23, 1
      %p165 = por %p163, %p164
      %p167 = scmp.ne.s32.totalorder %s152, %s166
      %p168 = scmp.eq.s32.totalorder %s23, 0
      %p169 = por %p167, %p168
      %s171 = sadd.s32 %s170, 1
      %p174 = scmp.eq.s32.totalorder %s17, 1
      %p175 = scmp.ne.s32.totalorder %s170, %s172
      %p176 = scmp.eq.s32.totalorder %s17, 0
      %p177 = por %p175, %p176
      %p178 = scmp.ne.s32.totalorder %s170, %s172
      %p179 = scmp.eq.s32.totalorder %s22, 1
      %p180 = por %p178, %p179
      %p181 = scmp.ne.s32.totalorder %s172, %s173
      %p182 = scmp.eq.s32.totalorder %s22, 0
      %p183 = por %p181, %p182
      %p184 = scmp.ne.s32.totalorder %s172, %s173
      %p185 = scmp.eq.s32.totalorder %s23, 1
      %p186 = por %p184, %p185
      %p188 = scmp.ne.s32.totalorder %s173, %s187
      %p189 = scmp.eq.s32.totalorder %s23, 0
      %p190 = por %p188, %p189
      %s191 = ssub.s32 %s24, %s36
      %s192 = ssub.s32 %s25, %s32
      %s193 = sor.u32 %s191, %s192
      %p194 = scmp.eq.s32.totalorder %s193, 0
      %s196 = sadd.s32 %s195, 1
      %s197 = scalar_select %p194, %s195, %s196
      %p200 = pneg %p194
      %p201 = scmp.eq.s32.totalorder %s17, 1
      %p202 = por %p200, %p201
      %p203 = scmp.ne.s32.totalorder %s195, %s198
      %p204 = scmp.eq.s32.totalorder %s17, 0
      %p205 = por %p203, %p204
      %p206 = scmp.ne.s32.totalorder %s195, %s198
      %p207 = scmp.eq.s32.totalorder %s22, 1
      %p208 = por %p206, %p207
      %p209 = scmp.ne.s32.totalorder %s198, %s199
      %p210 = scmp.eq.s32.totalorder %s22, 0
      %p211 = por %p209, %p210
      %p212 = scmp.ne.s32.totalorder %s198, %s199
      %p213 = scmp.eq.s32.totalorder %s23, 1
      %p214 = por %p212, %p213
      %p216 = scmp.ne.s32.totalorder %s199, %s215
      %p217 = scmp.eq.s32.totalorder %s23, 0
      %p218 = por %p216, %p217
      %p219 = scmp.le.s32.totalorder 1, %s17
      %p220 = scmp.lt.s32.totalorder %s17, 3
      %p221 = pnand %p219, %p220
      %p222 = pneg %p221
      // Predicated region
      $region9: #{tpu_custom_call.1} parent=5 // pred_check
        _
      $region10: #{tpu_custom_call.1} parent=5 // pred_check_branch
        %224 = sbr.rel (%p221) target = $region12
      $region11: #{tpu_custom_call.1} parent=5 // pred_region
        %s225 = ssub.s32 %s17, 1
        // Predicated region
        $region13: #{tpu_custom_call.1} parent=11 // pred_check
          %p226 = pneg %p78
        $region14: #{tpu_custom_call.1} parent=11 // pred_check_branch
          %228 = sbr.rel (%p226) target = $region16
        $region15: #{tpu_custom_call.1} parent=11 // pred_region
          _
        $region16: #{tpu_custom_call.1} parent=11 // pred_fallthru
          _
        // Predicated region
        $region17: #{tpu_custom_call.1} parent=11 // pred_check
          %p229 = pneg %p99
        $region18: #{tpu_custom_call.1} parent=11 // pred_check_branch
          %231 = sbr.rel (%p229) target = $region20
        $region19: #{tpu_custom_call.1} parent=11 // pred_region
          _
        $region20: #{tpu_custom_call.1} parent=11 // pred_fallthru
          _
        // Predicated region
        $region21: #{tpu_custom_call.1} parent=11 // pred_check
          %p232 = pneg %p120
        $region22: #{tpu_custom_call.1} parent=11 // pred_check_branch
          %234 = sbr.rel (%p232) target = $region24
        $region23: #{tpu_custom_call.1} parent=11 // pred_region
          _
        $region24: #{tpu_custom_call.1} parent=11 // pred_fallthru
          _
        // Predicated region
        $region25: #{tpu_custom_call.1} parent=11 // pred_check
          %p235 = pneg %p141
        $region26: #{tpu_custom_call.1} parent=11 // pred_check_branch
          %237 = sbr.rel (%p235) target = $region28
        $region27: #{tpu_custom_call.1} parent=11 // pred_region
          %s239 = ssub.s32 16, 16
          %240 = vsyncadd [#allocation3], %s239
          %s242 = sshll.u32 [#allocation2], 4
          %s243 = int_to_ptr.vmem [resolvable:$true] %s242
          %245 = dma.hbm_to_vmem [thread:$0]  %s4, 16, %s243, [#allocation3]
        $region28: #{tpu_custom_call.1} parent=11 // pred_fallthru
          _
        // Predicated region
        $region29: #{tpu_custom_call.1} parent=11 // pred_check
          %p246 = pneg %p162
        $region30: #{tpu_custom_call.1} parent=11 // pred_check_branch
          %248 = sbr.rel (%p246) target = $region32
        $region31: #{tpu_custom_call.1} parent=11 // pred_region
          _
        $region32: #{tpu_custom_call.1} parent=11 // pred_fallthru
          _
        // Predicated region
        $region33: #{tpu_custom_call.1} parent=11 // pred_check
          %p249 = pneg %p183
        $region34: #{tpu_custom_call.1} parent=11 // pred_check_branch
          %251 = sbr.rel (%p249) target = $region36
        $region35: #{tpu_custom_call.1} parent=11 // pred_region
          _
        $region36: #{tpu_custom_call.1} parent=11 // pred_fallthru
          _
      $region12: #{tpu_custom_call.1} parent=5 // pred_fallthru
        _
      %p252 = scmp.lt.s32.totalorder %s17, 2
      // Predicated region
      $region37: #{tpu_custom_call.1} parent=5 // pred_check
        %p253 = pneg %p252
      $region38: #{tpu_custom_call.1} parent=5 // pred_check_branch
        %255 = sbr.rel (%p253) target = $region40
      $region39: #{tpu_custom_call.1} parent=5 // pred_region
        // Predicated region
        $region41: #{tpu_custom_call.1} parent=39 // pred_check
          %p256 = pneg %p51
        $region42: #{tpu_custom_call.1} parent=39 // pred_check_branch
          %258 = sbr.rel (%p256) target = $region44
        $region43: #{tpu_custom_call.1} parent=39 // pred_region
          %s259 = smul.u32 2, %s25
          %p260 = scmp.lt.s32.totalorder %s24, 1
          %s261 = scalar_select %p260, %s24, 1
          %p262 = scmp.lt.s32.totalorder %s259, 1
          %s263 = scalar_select %p262, %s259, 1
          %s264 = smul.addr %s261, 2
          %s265 = sadd.s32 %s263, %s264
          %s266 = smul.addr %s265, 8
          %s267 = scalar_lea.vmem %s0, %s266
          %s268 = smul.u32 2, %s25
        $region44: #{tpu_custom_call.1} parent=39 // pred_fallthru
          _
      $region40: #{tpu_custom_call.1} parent=5 // pred_fallthru
        _
      %p269 = scmp.le.s32.totalorder 1, %s17
      %p270 = scmp.lt.s32.totalorder %s17, 3
      %p271 = pnand %p269, %p270
      %p272 = pneg %p271
      // Predicated region
      $region45: #{tpu_custom_call.1} parent=5 // pred_check
        _
      $region46: #{tpu_custom_call.1} parent=5 // pred_check_branch
        %274 = sbr.rel (%p271) target = $region48
      $region47: #{tpu_custom_call.1} parent=5 // pred_region
        %s275 = ssub.s32 %s17, 1
        // Predicated region
        $region49: #{tpu_custom_call.1} parent=47 // pred_check
          %p276 = pneg %p141
        $region50: #{tpu_custom_call.1} parent=47 // pred_check_branch
          %278 = sbr.rel (%p276) target = $region52
        $region51: #{tpu_custom_call.1} parent=47 // pred_region
          %279 = dma.done [#allocation3], 16
        $region52: #{tpu_custom_call.1} parent=47 // pred_fallthru
          _
        %s280 = smul.u32 2, %s27
        %p281 = scmp.lt.s32.totalorder %s26, 1
        %s282 = scalar_select %p281, %s26, 1
        %p283 = scmp.lt.s32.totalorder %s280, 1
        %s284 = scalar_select %p283, %s280, 1
        %s285 = smul.addr %s282, 2
        %s286 = sadd.s32 %s284, %s285
        %s287 = smul.addr %s286, 8
        %s288 = scalar_lea.vmem %s0, %s287
        %p289 = pneg %p57
        %p290 = pneg %p54
        %p291 = pneg %p78
        %p292 = pneg %p75
        %p293 = pneg %p99
        %p294 = pneg %p96
        %p295 = pneg %p120
        %p296 = pneg %p117
        %p297 = pneg %p141
        %p298 = pneg %p138
        %p299 = pneg %p162
        %p300 = pneg %p159
        %p301 = pneg %p183
        %p302 = pneg %p180
        %p303 = pneg %p211
        %p304 = pneg %p208
        %s305 = sand.u32 %s198, 1
        %s306 = scalar_lea.sflag [#allocation4], %s305
        %s307 = sand.u32 %s198, 1
        %s308 = smul.addr %s307, 16
        %s309 = scalar_lea.vmem [#allocation5], %s308
        %s310 = smul.u32 2, %s27
        %p311 = scmp.lt.s32.totalorder %s26, 1
        %s312 = scalar_select %p311, %s26, 1
        %p313 = scmp.lt.s32.totalorder %s310, 1
        %s314 = scalar_select %p313, %s310, 1
        %s315 = smul.addr %s312, 2
        %s316 = sadd.s32 %s314, %s315
        %s317 = smul.addr %s316, 8
        %s318 = scalar_lea.vmem %s0, %s317
        %s319 = smul.u32 2, %s27
        %s320 = smul.u32 2, %s27
        %v322 = vld [vmem:[%s318] sm:$0xff]
        %v323 = vld [vmem:[%s318 + $0x8] sm:$0xff]
        %v324 = vld [vmem:[%s1] sm:$0x1]
        %v325 = vld [vmem:[%s2] sm:$0x1]
        %vm326 = vcmask 261120
        %v327 = vsel %vm326, %v322, 0.0
        %328 = vadd.xlane.f32.xlu0 %v327
        %v329 = vpop.xlane.xlu0 %328
        %v330 = vsel %vm326, %v323, 0.0
        %331 = vadd.xlane.f32.xlu0 %v330
        %v332 = vpop.xlane.xlu0 %331
        %v333 = vrcp.pop 32.0
        %v334 = vmul.f32 %v329, %v333
        %v335 = vmul.f32 %v332, %v333
        %v336 = vsub.f32 %v322, %v334
        %v337 = vsub.f32 %v323, %v335
        %v338 = vmul.f32 %v336, %v336
        %v339 = vmul.f32 %v337, %v337
        %v340 = vsel %vm326, %v338, 0.0
        %341 = vadd.xlane.f32.xlu0 %v340
        %v342 = vpop.xlane.xlu0 %341
        %v343 = vsel %vm326, %v339, 0.0
        %344 = vadd.xlane.f32.xlu0 %v343
        %v345 = vpop.xlane.xlu0 %344
        %v346 = vmul.f32 %v342, %v333
        %v347 = vmul.f32 %v345, %v333
        %v348 = vadd.f32 %v346, 1e-05
        %v349 = vadd.f32 %v347, 1e-05
        %v350 = vrsqrt.pop %v348
        %v351 = vrsqrt.pop %v349
        %v352 = vmul.f32 %v336, %v350
        %v353 = vmul.f32 %v337, %v351
        %v355 = vlaneseq
        %v356 = vshrl.u32 %v355, 7
        %v357 = vsub.s32 0, %v356
        %v358 = vrot.slane %v324, %v357
        %v360 = vmul.f32 %v352, %v358
        %v361 = vmul.f32 %v353, %v358
        %v363 = vlaneseq
        %v364 = vshrl.u32 %v363, 7
        %v365 = vsub.s32 0, %v364
        %v366 = vrot.slane %v325, %v365
        %v368 = vadd.f32 %v360, %v366
        %v369 = vadd.f32 %v361, %v366
        %v370 = vpack.c.bf16 %v369, %v368
        %v371 = vld [vmem:[%s3] sm:$0xf]
        %v372 = vld [vmem:[%s3 + $0x4] sm:$0xf]
        %v373 = vld [vmem:[%s3 + $0x8] sm:$0xf]
        %v374 = vld [vmem:[%s3 + $0xc] sm:$0xf]
        %v375 = vld [vmem:[#allocation2] sm:$0x1]
        %v377 = vlaneseq
        %v378 = vshrl.u32 %v377, 7
        %v379 = vsub.s32 0, %v378
        %v380 = vrot.slane %v375, %v379
        %v386 = vunpack.c.l.b16 %v371
        %v387 = vunpack.c.l.b16 %v372
        %v388 = vunpack.c.l.b16 %v373
        %v389 = vunpack.c.l.b16 %v374
        %v390 = vpack.c.b16 %v387, %v386
        %v391 = vpack.c.b16 %v389, %v388
        %v395 = vsel %vm326, %v370, 0
        %397 = vmatprep.subr.bf16.mxu0 0
        %398 = vmatpush1.bf16.msra.mxu0 %v390
        %399 = vmatprep.subr.bf16.mxu0 0
        %400 = vmatpush1.bf16.msra.mxu0 %v391
        %401 = vmatprep.subr.bf16.mxu0 0
        %402 = vmatpush1.bf16.msra.mxu0 0
        %403 = vmatprep.subr.bf16.mxu0 0
        %404 = vmatpush1.bf16.msra.mxu0 0
        %405 = vmatprep.subr.bf16.mxu0 0
        %406 = vmatpush1.bf16.msra.mxu0 0
        %407 = vmatprep.subr.bf16.mxu0 0
        %408 = vmatpush1.bf16.msra.mxu0 0
        %409 = vmatprep.subr.bf16.mxu0 0
        %410 = vmatpush1.bf16.msra.mxu0 0
        %411 = vmatprep.subr.bf16.mxu0 0
        %412 = vmatpush1.bf16.msra.mxu0 0
        %413 = vmatprep.subr.bf16.mxu0 0
        %414 = vmatpush1.bf16.msra.mxu0 0
        %415 = vmatprep.subr.bf16.mxu0 0
        %416 = vmatpush1.bf16.msra.mxu0 0
        %417 = vmatprep.subr.bf16.mxu0 0
        %418 = vmatpush1.bf16.msra.mxu0 0
        %419 = vmatprep.subr.bf16.mxu0 0
        %420 = vmatpush1.bf16.msra.mxu0 0
        %421 = vmatprep.subr.bf16.mxu0 0
        %422 = vmatpush1.bf16.msra.mxu0 0
        %423 = vmatprep.subr.bf16.mxu0 0
        %424 = vmatpush1.bf16.msra.mxu0 0
        %425 = vmatprep.subr.bf16.mxu0 0
        %426 = vmatpush1.bf16.msra.mxu0 0
        %427 = vmatprep.subr.bf16.mxu0 0
        %428 = vmatpush1.bf16.msra.mxu0 0
        %429 = vmatprep.mubr.bf16.mxu0 0
        %430 = vmatmul.mubr.bf16.gmra.mrb[0].mxu0 %v395
        %v431 = vpop.f32.mrb[0].mxu0
        %v432 = vadd.f32 %v380, %v431
        %v433 = vpop.f32.mrb[0].mxu0
        %v434 = vpop.f32.mrb[0].mxu0
        %v435 = vadd.f32 %v380, %v434
        %v436 = vpop.f32.mrb[0].mxu0
        %437 = vdwg.mxu0
        %v438 = vmax.f32 %v432, 0.0
        %v439 = vmax.f32 %v435, 0.0
        %v440 = vpack.c.bf16 %v439, %v438
        %v441 = vld [vmem:[%s5] sm:$0xf]
        %v442 = vld [vmem:[%s5 + $0x4] sm:$0xf]
        %v443 = vld [vmem:[%s5 + $0x8] sm:$0xf]
        %v444 = vld [vmem:[%s5 + $0xc] sm:$0xf]
        %v445 = vld [vmem:[%s5 + $0x10] sm:$0xf]
        %v446 = vld [vmem:[%s5 + $0x14] sm:$0xf]
        %v447 = vld [vmem:[%s5 + $0x18] sm:$0xf]
        %v448 = vld [vmem:[%s5 + $0x1c] sm:$0xf]
        %v449 = vld [vmem:[%s6] sm:$0x1]
        %v451 = vlaneseq
        %v452 = vshrl.u32 %v451, 7
        %v453 = vsub.s32 0, %v452
        %v454 = vrot.slane %v449, %v453
        %v464 = vunpack.c.l.b16 %v441
        %v465 = vunpack.c.l.b16 %v442
        %v466 = vunpack.c.l.b16 %v443
        %v467 = vunpack.c.l.b16 %v444
        %v468 = vunpack.c.l.b16 %v445
        %v469 = vunpack.c.l.b16 %v446
        %v470 = vunpack.c.l.b16 %v447
        %v471 = vunpack.c.l.b16 %v448
        %v472 = vpack.c.b16 %v465, %v464
        %v473 = vpack.c.b16 %v467, %v466
        %v474 = vpack.c.b16 %v469, %v468
        %v475 = vpack.c.b16 %v471, %v470
        %vm480 = vcmask 523264
        %v482 = vsel %vm480, %v440, 0
        %484 = vmatprep.subr.bf16.mxu0 0
        %485 = vmatpush1.bf16.msra.mxu0 %v472
        %486 = vmatprep.subr.bf16.mxu0 0
        %487 = vmatpush1.bf16.msra.mxu0 %v473
        %488 = vmatprep.subr.bf16.mxu0 0
        %489 = vmatpush1.bf16.msra.mxu0 %v474
        %490 = vmatprep.subr.bf16.mxu0 0
        %491 = vmatpush1.bf16.msra.mxu0 %v475
        %492 = vmatprep.subr.bf16.mxu0 0
        %493 = vmatpush1.bf16.msra.mxu0 0
        %494 = vmatprep.subr.bf16.mxu0 0
        %495 = vmatpush1.bf16.msra.mxu0 0
        %496 = vmatprep.subr.bf16.mxu0 0
        %497 = vmatpush1.bf16.msra.mxu0 0
        %498 = vmatprep.subr.bf16.mxu0 0
        %499 = vmatpush1.bf16.msra.mxu0 0
        %500 = vmatprep.subr.bf16.mxu0 0
        %501 = vmatpush1.bf16.msra.mxu0 0
        %502 = vmatprep.subr.bf16.mxu0 0
        %503 = vmatpush1.bf16.msra.mxu0 0
        %504 = vmatprep.subr.bf16.mxu0 0
        %505 = vmatpush1.bf16.msra.mxu0 0
        %506 = vmatprep.subr.bf16.mxu0 0
        %507 = vmatpush1.bf16.msra.mxu0 0
        %508 = vmatprep.subr.bf16.mxu0 0
        %509 = vmatpush1.bf16.msra.mxu0 0
        %510 = vmatprep.subr.bf16.mxu0 0
        %511 = vmatpush1.bf16.msra.mxu0 0
        %512 = vmatprep.subr.bf16.mxu0 0
        %513 = vmatpush1.bf16.msra.mxu0 0
        %514 = vmatprep.subr.bf16.mxu0 0
        %515 = vmatpush1.bf16.msra.mxu0 0
        %516 = vmatprep.mubr.bf16.mxu0 0
        %517 = vmatmul.mubr.bf16.gmra.mrb[0].mxu0 %v482
        %v518 = vpop.f32.mrb[0].mxu0
        %v519 = vadd.f32 %v454, %v518
        %v520 = vpop.f32.mrb[0].mxu0
        %v521 = vpop.f32.mrb[0].mxu0
        %v522 = vadd.f32 %v454, %v521
        %v523 = vpop.f32.mrb[0].mxu0
        %524 = vdwg.mxu0
        %v525 = vmul.f32 %v519, 0.5
        %v526 = vmul.f32 %v522, 0.5
        %v527 = vadd.f32 %v322, %v525
        %v528 = vadd.f32 %v323, %v526
        %529 = vst.msk [vmem:[%s309] sm:$0xff] %vm326, %v527
        %530 = vst.msk [vmem:[%s309 + $0x8] sm:$0xff] %vm326, %v528
        %s531 = sand.u32 %s198, 1
        %s532 = scalar_lea.sflag [#allocation4], %s531
        %s533 = sand.u32 %s198, 1
        %s534 = smul.addr %s533, 16
        %s535 = scalar_lea.vmem [#allocation5], %s534
        // Predicated region
        $region53: #{tpu_custom_call.1} parent=47 // pred_check
          %p536 = pneg %p208
        $region54: #{tpu_custom_call.1} parent=47 // pred_check_branch
          %538 = sbr.rel (%p536) target = $region56
        $region55: #{tpu_custom_call.1} parent=47 // pred_region
          %s539 = smul.u32 2, %s27
          %s541 = ssub.s32 256, 256
          %542 = vsyncadd %s532, %s541
          %s543 = smul.addr %s26, 2
          %s544 = sadd.s32 %s539, %s543
          %s545 = smul.addr %s544, 128
          %s546 = scalar_lea.hbm %s7, %s545
          %s547 = sshll.u32 %s535, 4
          %s548 = int_to_ptr.vmem [resolvable:$true] %s547
          %553 = dma.vmem_to_hbm [thread:$0]  %s548, 256, %s546, %s532, 128, 128, 8
        $region56: #{tpu_custom_call.1} parent=47 // pred_fallthru
          _
      $region48: #{tpu_custom_call.1} parent=5 // pred_fallthru
        _
      %p554 = scmp.le.s32.totalorder 2, %s17
      // Predicated region
      $region57: #{tpu_custom_call.1} parent=5 // pred_check
        %p555 = pneg %p554
      $region58: #{tpu_custom_call.1} parent=5 // pred_check_branch
        %557 = sbr.rel (%p555) target = $region60
      $region59: #{tpu_custom_call.1} parent=5 // pred_region
        %s558 = ssub.s32 %s17, 2
        // Predicated region
        $region61: #{tpu_custom_call.1} parent=59 // pred_check
          %p559 = pneg %p214
        $region62: #{tpu_custom_call.1} parent=59 // pred_check_branch
          %561 = sbr.rel (%p559) target = $region64
        $region63: #{tpu_custom_call.1} parent=59 // pred_region
          %s562 = sand.u32 %s199, 1
          %s563 = scalar_lea.sflag [#allocation4], %s562
          %s564 = sand.u32 %s199, 1
          %s565 = smul.addr %s564, 16
          %s566 = scalar_lea.vmem [#allocation5], %s565
          %567 = dma.done %s563, 256
        $region64: #{tpu_custom_call.1} parent=59 // pred_fallthru
          _
      $region60: #{tpu_custom_call.1} parent=5 // pred_fallthru
        _
    $region6: #{tpu_custom_call.1} parent=1 // loop_footer
      %s21 = sadd.s32 1, %s17
    $region7: #{tpu_custom_call.1} parent=1 // loop_footer_branch
      %16 = sbr.rel target = $region3
    $region8: #{tpu_custom_call.1} parent=1 // loop_exit
      _
    %568 = vsyncpa [#allocation3], 1
    %s569 = scalar_lea.sflag [#allocation3], 1
    %570 = vsyncpa %s569, 1
    %571 = vsyncpa [#allocation4], 1
    %s572 = scalar_lea.sflag [#allocation4], 1
    %573 = vsyncpa %s572, 1

</llo_original>
